<compile_context>
chip_gen: v7x
topology: tpu7x:2x2x1
jax: 0.10.0
libtpu: 0.0.40
codegen_flags: <defaults>
</compile_context>

<pallas_src>
import math

import jax
import jax.numpy as jnp
from jax.experimental import pallas as pl
from jax.experimental.pallas import tpu as pltpu


def make_sublayer_connection_kernel(D, eps=1e-6):
    def kernel(x_ref, g_ref, be_ref, w1_ref, b1_ref, w2_ref, b2_ref, out_ref):
        x = x_ref[...]                                     # (rows, D)

        # ---- LayerNorm (torch semantics: unbiased std, eps on std) --------
        mean = jnp.mean(x, axis=-1, keepdims=True)
        centered = x - mean                                # computed once
        var = jnp.sum(centered * centered, axis=-1, keepdims=True) * (1.0 / (D - 1))
        xn = g_ref[...] * centered / (jnp.sqrt(var) + eps) + be_ref[...]

        # ---- sublayer: position-wise feed-forward --------------------------
        h = jnp.maximum(
            jnp.dot(xn, w1_ref[...], preferred_element_type=jnp.float32)
            + b1_ref[...],
            0.0)
        y = jnp.dot(h, w2_ref[...], preferred_element_type=jnp.float32) + b2_ref[...]

        # ---- residual (dropout = identity in eval) -------------------------
        out_ref[...] = x + y

    return kernel


def sublayer_connection(x, params, *, block_rows=None):
    """x: (B, S, D) f32.  Returns (B, S, D) f32 = x + FFN(LayerNorm(x))."""
    B, S, D = x.shape
    ROWS = B * S

    # Single grid step by default (whole slab fits VMEM).  For larger inputs
    # pass block_rows (multiple of 8) to tile the row axis.
    if block_rows is None:
        block_rows = ROWS
    assert ROWS % block_rows == 0
    grid = (ROWS // block_rows,)

    row = lambda p: p.reshape(1, -1)
    weight_args = [
        row(params["gamma"]), row(params["beta"]),
        params["w1"], row(params["b1"]),
        params["w2"], row(params["b2"]),
    ]

    def const_spec(a):
        nd = a.ndim
        return pl.BlockSpec(a.shape, lambda i, _nd=nd: (0,) * _nd)

    x2d = x.reshape(ROWS, D)

    out2d = pl.pallas_call(
        make_sublayer_connection_kernel(D),
        out_shape=jax.ShapeDtypeStruct((ROWS, D), jnp.float32),
        grid=grid,
        in_specs=[pl.BlockSpec((block_rows, D), lambda i: (i, 0))]
                 + [const_spec(a) for a in weight_args],
        out_specs=pl.BlockSpec((block_rows, D), lambda i: (i, 0)),
        compiler_params=pltpu.CompilerParams(
            dimension_semantics=("parallel",)),
    )(x2d, *weight_args)

    return out2d.reshape(B, S, D)


def init_params(key, D, D_FF):
    k1, k2 = jax.random.split(key, 2)

    def w(k, shape, fan_in):
        return jax.random.normal(k, shape, jnp.float32) / math.sqrt(fan_in)

    return {
        "gamma": jnp.ones((D,), jnp.float32),
        "beta": jnp.zeros((D,), jnp.float32),
        "w1": w(k1, (D, D_FF), D), "b1": jnp.zeros((D_FF,), jnp.float32),
        "w2": w(k2, (D_FF, D), D_FF), "b2": jnp.zeros((D,), jnp.float32),
    }


def reference(x, params, eps=1e-6):
    """Pure-JAX reference: same math as the PyTorch module (dropout=identity)."""
    D = x.shape[-1]
    mean = jnp.mean(x, axis=-1, keepdims=True)
    var = jnp.sum((x - mean) ** 2, axis=-1, keepdims=True) / (D - 1)
    xn = params["gamma"] * (x - mean) / (jnp.sqrt(var) + eps) + params["beta"]
    h = jnp.maximum(
        jnp.dot(xn, params["w1"], precision=jax.lax.Precision.HIGHEST)
        + params["b1"], 0.0)
    y = jnp.dot(h, params["w2"], precision=jax.lax.Precision.HIGHEST) + params["b2"]
    return x + y


if __name__ == "__main__":
    B, S, D, D_FF = 2, 8, 32, 128
    key = jax.random.PRNGKey(0)
    kx, kp = jax.random.split(key, 2)

    x = jax.random.normal(kx, (B, S, D), jnp.float32)
    params = init_params(kp, D, D_FF)

    out = sublayer_connection(x, params)
    out = jax.block_until_ready(out)

    ref = reference(x, params)
    assert out.shape == (B, S, D)
    assert jnp.allclose(out, ref, atol=2e-3, rtol=2e-3), "mismatch vs reference"

    print("KERNEL_OK")
</pallas_src>

<mosaic_0001>
module attributes {stable_mosaic.version = 11 : i64} {
  func.func @kernel(%arg0: i32, %arg1: memref<16x32xf32, #tpu.memory_space<vmem>>, %arg2: memref<1x32xf32, #tpu.memory_space<vmem>>, %arg3: memref<1x32xf32, #tpu.memory_space<vmem>>, %arg4: memref<32x128xf32, #tpu.memory_space<vmem>>, %arg5: memref<1x128xf32, #tpu.memory_space<vmem>>, %arg6: memref<128x32xf32, #tpu.memory_space<vmem>>, %arg7: memref<1x32xf32, #tpu.memory_space<vmem>>, %arg8: memref<16x32xf32, #tpu.memory_space<vmem>>) attributes {dimension_semantics = [#tpu.dimension_semantics<parallel>], iteration_bounds = array<i64: 1>, scalar_prefetch = 0 : i64, scratch_operands = 0 : i64, tpu.core_type = #tpu.core_type<tc>, window_params = [{transform_indices = @transform_0, window_bounds = array<i64: 16, 32>}, {pipeline_mode = #tpu.pipeline_mode<synchronous>, transform_indices = @transform_1, window_bounds = array<i64: 1, 32>}, {pipeline_mode = #tpu.pipeline_mode<synchronous>, transform_indices = @transform_2, window_bounds = array<i64: 1, 32>}, {pipeline_mode = #tpu.pipeline_mode<synchronous>, transform_indices = @transform_3, window_bounds = array<i64: 32, 128>}, {pipeline_mode = #tpu.pipeline_mode<synchronous>, transform_indices = @transform_4, window_bounds = array<i64: 1, 128>}, {pipeline_mode = #tpu.pipeline_mode<synchronous>, transform_indices = @transform_5, window_bounds = array<i64: 128, 32>}, {pipeline_mode = #tpu.pipeline_mode<synchronous>, transform_indices = @transform_6, window_bounds = array<i64: 1, 32>}, {transform_indices = @transform_7, window_bounds = array<i64: 16, 32>}]} {
    %c0 = arith.constant 0 : index
    %c0_0 = arith.constant 0 : index
    %0 = vector.load %arg1[%c0, %c0_0] : memref<16x32xf32, #tpu.memory_space<vmem>>, vector<16x32xf32>
    %cst = arith.constant dense<0.000000e+00> : vector<16xf32>
    %1 = vector.multi_reduction <add>, %0, %cst [1] : vector<16x32xf32> to vector<16xf32>
    %2 = vector.shape_cast %1 : vector<16xf32> to vector<16x1xf32>
    %cst_1 = arith.constant 3.200000e+01 : f32
    %3 = vector.broadcast %cst_1 : f32 to vector<16x1xf32>
    %4 = arith.divf %2, %3 : vector<16x1xf32>
    %5 = vector.broadcast %4 : vector<16x1xf32> to vector<16x32xf32>
    %6 = arith.subf %0, %5 : vector<16x32xf32>
    %7 = arith.mulf %6, %6 : vector<16x32xf32>
    %cst_2 = arith.constant dense<0.000000e+00> : vector<16xf32>
    %8 = vector.multi_reduction <add>, %7, %cst_2 [1] : vector<16x32xf32> to vector<16xf32>
    %9 = vector.shape_cast %8 : vector<16xf32> to vector<16x1xf32>
    %cst_3 = arith.constant 0.0322580636 : f32
    %10 = vector.broadcast %cst_3 : f32 to vector<16x1xf32>
    %11 = arith.mulf %9, %10 : vector<16x1xf32>
    %c0_4 = arith.constant 0 : index
    %c0_5 = arith.constant 0 : index
    %12 = vector.load %arg2[%c0_4, %c0_5] : memref<1x32xf32, #tpu.memory_space<vmem>>, vector<1x32xf32>
    %13 = vector.broadcast %12 : vector<1x32xf32> to vector<16x32xf32>
    %14 = arith.mulf %13, %6 : vector<16x32xf32>
    %15 = math.sqrt %11 : vector<16x1xf32>
    %cst_6 = arith.constant 9.99999997E-7 : f32
    %16 = vector.broadcast %cst_6 : f32 to vector<16x1xf32>
    %17 = arith.addf %15, %16 : vector<16x1xf32>
    %18 = vector.broadcast %17 : vector<16x1xf32> to vector<16x32xf32>
    %19 = arith.divf %14, %18 : vector<16x32xf32>
    %c0_7 = arith.constant 0 : index
    %c0_8 = arith.constant 0 : index
    %20 = vector.load %arg3[%c0_7, %c0_8] : memref<1x32xf32, #tpu.memory_space<vmem>>, vector<1x32xf32>
    %21 = vector.broadcast %20 : vector<1x32xf32> to vector<16x32xf32>
    %22 = arith.addf %19, %21 : vector<16x32xf32>
    %c0_9 = arith.constant 0 : index
    %c0_10 = arith.constant 0 : index
    %23 = vector.load %arg4[%c0_9, %c0_10] : memref<32x128xf32, #tpu.memory_space<vmem>>, vector<32x128xf32>
    %cst_11 = arith.constant dense<0.000000e+00> : vector<16x128xf32>
    %24 = tpu.matmul %22, %23, %cst_11 {dimension_numbers = #tpu.dot_dimension_numbers<[1], [0], [0], [1], [0, 0, 1, 1], [], []>} : vector<16x32xf32>, vector<32x128xf32>, vector<16x128xf32> -> vector<16x128xf32>
    %c0_12 = arith.constant 0 : index
    %c0_13 = arith.constant 0 : index
    %25 = vector.load %arg5[%c0_12, %c0_13] : memref<1x128xf32, #tpu.memory_space<vmem>>, vector<1x128xf32>
    %26 = vector.broadcast %25 : vector<1x128xf32> to vector<16x128xf32>
    %27 = arith.addf %24, %26 : vector<16x128xf32>
    %cst_14 = arith.constant 0.000000e+00 : f32
    %28 = vector.broadcast %cst_14 : f32 to vector<16x128xf32>
    %29 = arith.maximumf %27, %28 : vector<16x128xf32>
    %c0_15 = arith.constant 0 : index
    %c0_16 = arith.constant 0 : index
    %30 = vector.load %arg6[%c0_15, %c0_16] : memref<128x32xf32, #tpu.memory_space<vmem>>, vector<128x32xf32>
    %cst_17 = arith.constant dense<0.000000e+00> : vector<16x32xf32>
    %31 = tpu.matmul %29, %30, %cst_17 {dimension_numbers = #tpu.dot_dimension_numbers<[1], [0], [0], [1], [0, 0, 1, 1], [], []>} : vector<16x128xf32>, vector<128x32xf32>, vector<16x32xf32> -> vector<16x32xf32>
    %c0_18 = arith.constant 0 : index
    %c0_19 = arith.constant 0 : index
    %32 = vector.load %arg7[%c0_18, %c0_19] : memref<1x32xf32, #tpu.memory_space<vmem>>, vector<1x32xf32>
    %33 = vector.broadcast %32 : vector<1x32xf32> to vector<16x32xf32>
    %34 = arith.addf %31, %33 : vector<16x32xf32>
    %35 = arith.addf %0, %34 : vector<16x32xf32>
    %c0_20 = arith.constant 0 : index
    %c0_21 = arith.constant 0 : index
    %36 = vector.load %arg8[%c0_20, %c0_21] : memref<16x32xf32, #tpu.memory_space<vmem>>, vector<16x32xf32>
    tpu.vector_store %arg8[%c0_20, %c0_21], %35 {strides = array<i32>} : memref<16x32xf32, #tpu.memory_space<vmem>>, vector<16x32xf32>,
    return
  }
  func.func @transform_0(%arg0: i32) -> (i32, i32) {
    %c0_i32 = arith.constant 0 : i32
    %c0_i32_0 = arith.constant 0 : i32
    return %arg0, %c0_i32 : i32, i32
  }
  func.func @transform_1(%arg0: i32) -> (i32, i32) {
    %c0_i32 = arith.constant 0 : i32
    %c0_i32_0 = arith.constant 0 : i32
    %c0_i32_1 = arith.constant 0 : i32
    return %c0_i32, %c0_i32_0 : i32, i32
  }
  func.func @transform_2(%arg0: i32) -> (i32, i32) {
    %c0_i32 = arith.constant 0 : i32
    %c0_i32_0 = arith.constant 0 : i32
    %c0_i32_1 = arith.constant 0 : i32
    return %c0_i32, %c0_i32_0 : i32, i32
  }
  func.func @transform_3(%arg0: i32) -> (i32, i32) {
    %c0_i32 = arith.constant 0 : i32
    %c0_i32_0 = arith.constant 0 : i32
    %c0_i32_1 = arith.constant 0 : i32
    return %c0_i32, %c0_i32_0 : i32, i32
  }
  func.func @transform_4(%arg0: i32) -> (i32, i32) {
    %c0_i32 = arith.constant 0 : i32
    %c0_i32_0 = arith.constant 0 : i32
    %c0_i32_1 = arith.constant 0 : i32
    return %c0_i32, %c0_i32_0 : i32, i32
  }
  func.func @transform_5(%arg0: i32) -> (i32, i32) {
    %c0_i32 = arith.constant 0 : i32
    %c0_i32_0 = arith.constant 0 : i32
    %c0_i32_1 = arith.constant 0 : i32
    return %c0_i32, %c0_i32_0 : i32, i32
  }
  func.func @transform_6(%arg0: i32) -> (i32, i32) {
    %c0_i32 = arith.constant 0 : i32
    %c0_i32_0 = arith.constant 0 : i32
    %c0_i32_1 = arith.constant 0 : i32
    return %c0_i32, %c0_i32_0 : i32, i32
  }
  func.func @transform_7(%arg0: i32) -> (i32, i32) {
    %c0_i32 = arith.constant 0 : i32
    %c0_i32_0 = arith.constant 0 : i32
    return %arg0, %c0_i32 : i32, i32
  }
}

</mosaic_0001>

<llo_original>
// kernel: tpu_custom_call.1
$region0: #{tpu_custom_call.1}
  #allocation0 [shape = 'u32[]', space=smem, size = 0x4, offset = 0x4, fixed_abs, tag = 'smem constant byte address 0x4 - core index']
  #allocation1 [shape = 'u32[144,128]{1,0:T(1,128)}', space=vmem, size = 0x12000, scoped, tag = 'internal scratch']
  %s0 = inlined_call_operand.vmem [shape: f32[16,32], index: 0, kind: input, shape index: {}]
  %s1 = inlined_call_operand.vmem [shape: f32[1,32], index: 1, kind: input, shape index: {}]
  %s2 = inlined_call_operand.vmem [shape: f32[1,32], index: 2, kind: input, shape index: {}]
  %s3 = inlined_call_operand.vmem [shape: f32[32,128], index: 3, kind: input, shape index: {}]
  %s4 = inlined_call_operand.vmem [shape: f32[1,128], index: 4, kind: input, shape index: {}]
  %s5 = inlined_call_operand.vmem [shape: f32[128,32], index: 5, kind: input, shape index: {}]
  %s6 = inlined_call_operand.vmem [shape: f32[1,32], index: 6, kind: input, shape index: {}]
  %s7 = inlined_call_operand.hbm [shape: f32[16,32], index: 7, kind: output, shape index: {}]
  %s8 = sld [smem:[#allocation0]]
  $region38: #{tpu_custom_call.1} parent=0
    _
  %s10 = ssub.s32 1, %s8
  %s11 = scalar_select 0, %s10, %s8
  $region1: #{tpu_custom_call.1} parent=0
    #allocation2 [shape = 'u8[8192]{0}', space=vmem, size = 0x2000, scoped, tag = 'output window, operand 0, single buffered']
    #allocation3 [shape = 's32[1]{0}', space=sflag, size = 0x4, scoped, tag = 'scoped memory for tpu_custom_call.1']
    %12 = vsyncpa [#allocation3], 0
    // Predicated region
    $region2: #{tpu_custom_call.1} parent=1 // pred_check
      _
    $region3: #{tpu_custom_call.1} parent=1 // pred_check_branch
      %14 = sbr.rel (0) target = $region5
    $region4: #{tpu_custom_call.1} parent=1 // pred_region
      _
    $region5: #{tpu_custom_call.1} parent=1 // pred_fallthru
      _
    // Predicated region
    $region6: #{tpu_custom_call.1} parent=1 // pred_check
      _
    $region7: #{tpu_custom_call.1} parent=1 // pred_check_branch
      %16 = sbr.rel (0) target = $region9
    $region8: #{tpu_custom_call.1} parent=1 // pred_region
      _
    $region9: #{tpu_custom_call.1} parent=1 // pred_fallthru
      _
    // Predicated region
    $region10: #{tpu_custom_call.1} parent=1 // pred_check
      _
    $region11: #{tpu_custom_call.1} parent=1 // pred_check_branch
      %18 = sbr.rel (0) target = $region13
    $region12: #{tpu_custom_call.1} parent=1 // pred_region
      _
    $region13: #{tpu_custom_call.1} parent=1 // pred_fallthru
      _
    // Predicated region
    $region14: #{tpu_custom_call.1} parent=1 // pred_check
      _
    $region15: #{tpu_custom_call.1} parent=1 // pred_check_branch
      %20 = sbr.rel (0) target = $region17
    $region16: #{tpu_custom_call.1} parent=1 // pred_region
      _
    $region17: #{tpu_custom_call.1} parent=1 // pred_fallthru
      _
    // Predicated region
    $region18: #{tpu_custom_call.1} parent=1 // pred_check
      _
    $region19: #{tpu_custom_call.1} parent=1 // pred_check_branch
      %22 = sbr.rel (0) target = $region21
    $region20: #{tpu_custom_call.1} parent=1 // pred_region
      _
    $region21: #{tpu_custom_call.1} parent=1 // pred_fallthru
      _
    // Predicated region
    $region22: #{tpu_custom_call.1} parent=1 // pred_check
      _
    $region23: #{tpu_custom_call.1} parent=1 // pred_check_branch
      %24 = sbr.rel (0) target = $region25
    $region24: #{tpu_custom_call.1} parent=1 // pred_region
      _
    $region25: #{tpu_custom_call.1} parent=1 // pred_fallthru
      _
    // Predicated region
    $region26: #{tpu_custom_call.1} parent=1 // pred_check
      _
    $region27: #{tpu_custom_call.1} parent=1 // pred_check_branch
      %26 = sbr.rel (0) target = $region29
    $region28: #{tpu_custom_call.1} parent=1 // pred_region
      _
    $region29: #{tpu_custom_call.1} parent=1 // pred_fallthru
      _
    %v27 = vld [vmem:[%s0] sm:$0xff]
    %v28 = vld [vmem:[%s0 + $0x8] sm:$0xff]
    %vm29 = vcmask 261120
    %v30 = vsel %vm29, %v27, 0.0
    %31 = vadd.xlane.f32.xlu0 %v30
    %v32 = vpop.xlane.xlu0 %31
    %v33 = vsel %vm29, %v28, 0.0
    %34 = vadd.xlane.f32.xlu0 %v33
    %v35 = vpop.xlane.xlu0 %34
    %v36 = vrcp.pop 32.0
    %v37 = vmul.f32 %v32, %v36
    %v38 = vmul.f32 %v35, %v36
    %v39 = vsub.f32 %v27, %v37
    %v40 = vsub.f32 %v28, %v38
    %v41 = vmul.f32 %v39, %v39
    %v42 = vmul.f32 %v40, %v40
    %v43 = vsel %vm29, %v41, 0.0
    %44 = vadd.xlane.f32.xlu0 %v43
    %v45 = vpop.xlane.xlu0 %44
    %v46 = vsel %vm29, %v42, 0.0
    %47 = vadd.xlane.f32.xlu0 %v46
    %v48 = vpop.xlane.xlu0 %47
    %v49 = vmul.f32 %v45, 0.032258064
    %v50 = vmul.f32 %v48, 0.032258064
    %v51 = vld [vmem:[%s1] sm:$0x1]
    %v53 = vlaneseq
    %v54 = vshrl.u32 %v53, 7
    %v55 = vsub.s32 0, %v54
    %v56 = vrot.slane %v51, %v55
    %v58 = vmul.f32 %v56, %v39
    %v59 = vmul.f32 %v56, %v40
    %v60 = vrsqrt.pop %v49
    %v61 = vmul.f32 %v49, %v60
    %vm62 = vcmp.eq.f32.partialorder %v49, inf
    %v63 = vsel %vm62, %v49, %v61
    %vm64 = vcmp.eq.f32.partialorder %v49, 0.0
    %v65 = vand.u32 %v49, 2147483648
    %v66 = vsel %vm64, %v65, %v63
    %v67 = vrsqrt.pop %v50
    %v68 = vmul.f32 %v50, %v67
    %vm69 = vcmp.eq.f32.partialorder %v50, inf
    %v70 = vsel %vm69, %v50, %v68
    %vm71 = vcmp.eq.f32.partialorder %v50, 0.0
    %v72 = vand.u32 %v50, 2147483648
    %v73 = vsel %vm71, %v72, %v70
    %v74 = vadd.f32 %v66, 1e-06
    %v75 = vadd.f32 %v73, 1e-06
    %v76 = vrcp.pop %v74
    %v77 = vmul.f32 %v58, %v76
    %v78 = vrcp.pop %v75
    %v79 = vmul.f32 %v59, %v78
    %v80 = vld [vmem:[%s2] sm:$0x1]
    %v82 = vlaneseq
    %v83 = vshrl.u32 %v82, 7
    %v84 = vsub.s32 0, %v83
    %v85 = vrot.slane %v80, %v84
    %v87 = vadd.f32 %v77, %v85
    %v88 = vadd.f32 %v79, %v85
    %v89 = vld [vmem:[%s3] sm:$0xff]
    %v90 = vld [vmem:[%s3 + $0x8] sm:$0xff]
    %v91 = vld [vmem:[%s3 + $0x10] sm:$0xff]
    %v92 = vld [vmem:[%s3 + $0x18] sm:$0xff]
    %v93 = vld [vmem:[%s4] sm:$0x1]
    %v95 = vlaneseq
    %v96 = vshrl.u32 %v95, 7
    %v97 = vsub.s32 0, %v96
    %v98 = vrot.slane %v93, %v97
    %v101 = vsel %vm29, %v87, 0
    %v104 = vsel %vm29, %v88, 0
    %106 = vmatprep.subr.mxu0 0.0
    %107 = vmatpush1.msra.mxu0 %v89
    %108 = vmatprep.subr.mxu0 0.0
    %109 = vmatpush1.msra.mxu0 %v90
    %110 = vmatprep.subr.mxu0 0.0
    %111 = vmatpush1.msra.mxu0 %v91
    %112 = vmatprep.subr.mxu0 0.0
    %113 = vmatpush1.msra.mxu0 %v92
    %114 = vmatprep.subr.mxu0 0.0
    %115 = vmatpush1.msra.mxu0 0.0
    %116 = vmatprep.subr.mxu0 0.0
    %117 = vmatpush1.msra.mxu0 0.0
    %118 = vmatprep.subr.mxu0 0.0
    %119 = vmatpush1.msra.mxu0 0.0
    %120 = vmatprep.subr.mxu0 0.0
    %121 = vmatpush1.msra.mxu0 0.0
    %122 = vmatprep.subr.mxu0 0.0
    %123 = vmatpush1.msra.mxu0 0.0
    %124 = vmatprep.subr.mxu0 0.0
    %125 = vmatpush1.msra.mxu0 0.0
    %126 = vmatprep.subr.mxu0 0.0
    %127 = vmatpush1.msra.mxu0 0.0
    %128 = vmatprep.subr.mxu0 0.0
    %129 = vmatpush1.msra.mxu0 0.0
    %130 = vmatprep.subr.mxu0 0.0
    %131 = vmatpush1.msra.mxu0 0.0
    %132 = vmatprep.subr.mxu0 0.0
    %133 = vmatpush1.msra.mxu0 0.0
    %134 = vmatprep.subr.mxu0 0.0
    %135 = vmatpush1.msra.mxu0 0.0
    %136 = vmatprep.subr.mxu0 0.0
    %137 = vmatpush1.msra.mxu0 0.0
    %138 = vmatprep.subr.mxu0 0.0
    %139 = vmatpush1.msra.mxu0 0.0
    %140 = vmatprep.subr.mxu0 0.0
    %141 = vmatpush1.msra.mxu0 0.0
    %142 = vmatprep.subr.mxu0 0.0
    %143 = vmatpush1.msra.mxu0 0.0
    %144 = vmatprep.subr.mxu0 0.0
    %145 = vmatpush1.msra.mxu0 0.0
    %146 = vmatprep.subr.mxu0 0.0
    %147 = vmatpush1.msra.mxu0 0.0
    %148 = vmatprep.subr.mxu0 0.0
    %149 = vmatpush1.msra.mxu0 0.0
    %150 = vmatprep.subr.mxu0 0.0
    %151 = vmatpush1.msra.mxu0 0.0
    %152 = vmatprep.subr.mxu0 0.0
    %153 = vmatpush1.msra.mxu0 0.0
    %154 = vmatprep.subr.mxu0 0.0
    %155 = vmatpush1.msra.mxu0 0.0
    %156 = vmatprep.subr.mxu0 0.0
    %157 = vmatpush1.msra.mxu0 0.0
    %158 = vmatprep.subr.mxu0 0.0
    %159 = vmatpush1.msra.mxu0 0.0
    %160 = vmatprep.subr.mxu0 0.0
    %161 = vmatpush1.msra.mxu0 0.0
    %162 = vmatprep.subr.mxu0 0.0
    %163 = vmatpush1.msra.mxu0 0.0
    %164 = vmatprep.subr.mxu0 0.0
    %165 = vmatpush1.msra.mxu0 0.0
    %166 = vmatprep.subr.mxu0 0.0
    %167 = vmatpush1.msra.mxu0 0.0
    %168 = vmatprep.subr.mxu0 0.0
    %169 = vmatpush1.msra.mxu0 0.0
    %170 = vmatprep.mubr.f32.mxu0 0.0
    %171 = vmatmul.mubr.f32.gmra.mrb[0].mxu0 %v101
    %v172 = vpop.f32.mrb[0].mxu0
    %v173 = vadd.f32 %v98, %v172
    %v174 = vpop.f32.mrb[0].mxu0
    %175 = vmatprep.mubr.f32.mxu0 0.0
    %176 = vmatmul.mubr.f32.gmra.mrb[0].mxu0 %v104
    %v177 = vpop.f32.mrb[0].mxu0
    %v178 = vadd.f32 %v98, %v177
    %v179 = vpop.f32.mrb[0].mxu0
    %180 = vdwg.mxu0
    %v181 = vmax.f32 %v173, 0.0
    %v182 = vmax.f32 %v178, 0.0
    %v183 = vld [vmem:[%s5] sm:$0xff]
    %v184 = vld [vmem:[%s5 + $0x8] sm:$0xff]
    %v185 = vld [vmem:[%s5 + $0x10] sm:$0xff]
    %v186 = vld [vmem:[%s5 + $0x18] sm:$0xff]
    %v187 = vld [vmem:[%s5 + $0x20] sm:$0xff]
    %v188 = vld [vmem:[%s5 + $0x28] sm:$0xff]
    %v189 = vld [vmem:[%s5 + $0x30] sm:$0xff]
    %v190 = vld [vmem:[%s5 + $0x38] sm:$0xff]
    %v191 = vld [vmem:[%s5 + $0x40] sm:$0xff]
    %v192 = vld [vmem:[%s5 + $0x48] sm:$0xff]
    %v193 = vld [vmem:[%s5 + $0x50] sm:$0xff]
    %v194 = vld [vmem:[%s5 + $0x58] sm:$0xff]
    %v195 = vld [vmem:[%s5 + $0x60] sm:$0xff]
    %v196 = vld [vmem:[%s5 + $0x68] sm:$0xff]
    %v197 = vld [vmem:[%s5 + $0x70] sm:$0xff]
    %v198 = vld [vmem:[%s5 + $0x78] sm:$0xff]
    %v199 = vld [vmem:[%s6] sm:$0x1]
    %v201 = vlaneseq
    %v202 = vshrl.u32 %v201, 7
    %v203 = vsub.s32 0, %v202
    %v204 = vrot.slane %v199, %v203
    %206 = vmatprep.subr.mxu0 0.0
    %207 = vmatpush1.msra.mxu0 %v183
    %208 = vmatprep.subr.mxu0 0.0
    %209 = vmatpush1.msra.mxu0 %v184
    %210 = vmatprep.subr.mxu0 0.0
    %211 = vmatpush1.msra.mxu0 %v185
    %212 = vmatprep.subr.mxu0 0.0
    %213 = vmatpush1.msra.mxu0 %v186
    %214 = vmatprep.subr.mxu0 0.0
    %215 = vmatpush1.msra.mxu0 %v187
    %216 = vmatprep.subr.mxu0 0.0
    %217 = vmatpush1.msra.mxu0 %v188
    %218 = vmatprep.subr.mxu0 0.0
    %219 = vmatpush1.msra.mxu0 %v189
    %220 = vmatprep.subr.mxu0 0.0
    %221 = vmatpush1.msra.mxu0 %v190
    %222 = vmatprep.subr.mxu0 0.0
    %223 = vmatpush1.msra.mxu0 %v191
    %224 = vmatprep.subr.mxu0 0.0
    %225 = vmatpush1.msra.mxu0 %v192
    %226 = vmatprep.subr.mxu0 0.0
    %227 = vmatpush1.msra.mxu0 %v193
    %228 = vmatprep.subr.mxu0 0.0
    %229 = vmatpush1.msra.mxu0 %v194
    %230 = vmatprep.subr.mxu0 0.0
    %231 = vmatpush1.msra.mxu0 %v195
    %232 = vmatprep.subr.mxu0 0.0
    %233 = vmatpush1.msra.mxu0 %v196
    %234 = vmatprep.subr.mxu0 0.0
    %235 = vmatpush1.msra.mxu0 %v197
    %236 = vmatprep.subr.mxu0 0.0
    %237 = vmatpush1.msra.mxu0 %v198
    %238 = vmatprep.subr.mxu0 0.0
    %239 = vmatpush1.msra.mxu0 0.0
    %240 = vmatprep.subr.mxu0 0.0
    %241 = vmatpush1.msra.mxu0 0.0
    %242 = vmatprep.subr.mxu0 0.0
    %243 = vmatpush1.msra.mxu0 0.0
    %244 = vmatprep.subr.mxu0 0.0
    %245 = vmatpush1.msra.mxu0 0.0
    %246 = vmatprep.subr.mxu0 0.0
    %247 = vmatpush1.msra.mxu0 0.0
    %248 = vmatprep.subr.mxu0 0.0
    %249 = vmatpush1.msra.mxu0 0.0
    %250 = vmatprep.subr.mxu0 0.0
    %251 = vmatpush1.msra.mxu0 0.0
    %252 = vmatprep.subr.mxu0 0.0
    %253 = vmatpush1.msra.mxu0 0.0
    %254 = vmatprep.subr.mxu0 0.0
    %255 = vmatpush1.msra.mxu0 0.0
    %256 = vmatprep.subr.mxu0 0.0
    %257 = vmatpush1.msra.mxu0 0.0
    %258 = vmatprep.subr.mxu0 0.0
    %259 = vmatpush1.msra.mxu0 0.0
    %260 = vmatprep.subr.mxu0 0.0
    %261 = vmatpush1.msra.mxu0 0.0
    %262 = vmatprep.subr.mxu0 0.0
    %263 = vmatpush1.msra.mxu0 0.0
    %264 = vmatprep.subr.mxu0 0.0
    %265 = vmatpush1.msra.mxu0 0.0
    %266 = vmatprep.subr.mxu0 0.0
    %267 = vmatpush1.msra.mxu0 0.0
    %268 = vmatprep.subr.mxu0 0.0
    %269 = vmatpush1.msra.mxu0 0.0
    %270 = vmatprep.mubr.f32.mxu0 0.0
    %271 = vmatmul.mubr.f32.gmra.mrb[0].mxu0 %v181
    %v272 = vpop.f32.mrb[0].mxu0
    %v273 = vadd.f32 %v204, %v272
    %v274 = vpop.f32.mrb[0].mxu0
    %275 = vmatprep.mubr.f32.mxu0 0.0
    %276 = vmatmul.mubr.f32.gmra.mrb[0].mxu0 %v182
    %v277 = vpop.f32.mrb[0].mxu0
    %v278 = vadd.f32 %v204, %v277
    %v279 = vpop.f32.mrb[0].mxu0
    %280 = vdwg.mxu0
    %v281 = vadd.f32 %v27, %v273
    %v282 = vadd.f32 %v28, %v278
    %283 = vst.msk [vmem:[#allocation2] sm:$0xff] %vm29, %v281
    %284 = vst.msk [vmem:[#allocation2 + $0x8] sm:$0xff] %vm29, %v282
    // Predicated region
    $region30: #{tpu_custom_call.1} parent=1 // pred_check
      _
    $region31: #{tpu_custom_call.1} parent=1 // pred_check_branch
      %286 = sbr.rel (0) target = $region33
    $region32: #{tpu_custom_call.1} parent=1 // pred_region
      %s288 = ssub.s32 256, 256
      %289 = vsyncadd [#allocation3], %s288
      %s290 = sshll.u32 [#allocation2], 4
      %s291 = int_to_ptr.vmem [resolvable:$true] %s290
      %296 = dma.vmem_to_hbm [thread:$0]  %s291, 256, %s7, [#allocation3], 128, 128, 8
    $region33: #{tpu_custom_call.1} parent=1 // pred_fallthru
      _
    // Predicated region
    $region34: #{tpu_custom_call.1} parent=1 // pred_check
      _
    $region35: #{tpu_custom_call.1} parent=1 // pred_check_branch
      %298 = sbr.rel (0) target = $region37
    $region36: #{tpu_custom_call.1} parent=1 // pred_region
      %299 = dma.done [#allocation3], 256
    $region37: #{tpu_custom_call.1} parent=1 // pred_fallthru
      _
    %300 = vsyncpa [#allocation3], 1

</llo_original>
